<compile_context>
chip_gen: v7x
topology: tpu7x:2x2x1
jax: 0.10.0
libtpu: 0.0.40
codegen_flags: <defaults>
</compile_context>

<pallas_src>
import functools
import math

import jax
import jax.numpy as jnp
from jax import lax
from jax.experimental import pallas as pl
from jax.experimental.pallas import tpu as pltpu


# ------------------------- tiling / VMEM helpers ------------------------------

@functools.lru_cache(maxsize=None)
def _vmem_limit_bytes():
    """Per-generation scoped-VMEM budget (v5e/v6e: 128 MiB phys, v7x: 64 MiB)."""
    cap = 64 * 1024 * 1024                      # conservative default (v7x-sized)
    try:
        cap = int(pltpu.get_tpu_info().vmem_capacity_bytes)
    except Exception:
        pass
    return int(cap * 3 // 4)                    # headroom for double-buffering


@functools.lru_cache(maxsize=None)
def _tile_caps():
    """(TM, TN, TK) caps per TPU generation.

    v5e MXU is 4x128x128 -> keep N tiles at 128; v6e/v7x MXU is 2x256x256 ->
    256-wide N.  v7x has half of v6e's VMEM so keep the overall tile budget
    modest; v6e can afford larger M tiles."""
    kind = ""
    try:
        kind = jax.devices()[0].device_kind.lower()
    except Exception:
        pass
    if "v5 lite" in kind or "v5e" in kind or "v5lite" in kind:
        return 256, 128, 512
    if "v7" in kind:
        return 256, 256, 512
    return 512, 256, 512                        # v6e and other generations


def _pick_tile(n, cap, quantum):
    """Largest tile <= cap (multiple of `quantum`) dividing n; full dim if small."""
    if n <= cap:
        return n
    t = (cap // quantum) * quantum
    while t >= quantum:
        if n % t == 0:
            return t
        t -= quantum
    return n


# ------------------------------ linear (matmul) --------------------------------

def _linear_kernel(*refs, n_extra, activation):
    x_ref, w_ref = refs[0], refs[1]
    extra = refs[2:2 + n_extra]
    o_ref = refs[2 + n_extra]
    acc_ref = refs[3 + n_extra]

    k = pl.program_id(2)

    @pl.when(k == 0)
    def _():
        acc_ref[...] = jnp.zeros(acc_ref.shape, acc_ref.dtype)

    acc_ref[...] += jnp.dot(x_ref[...], w_ref[...],
                            preferred_element_type=jnp.float32)

    @pl.when(k == pl.num_programs(2) - 1)
    def _():
        y = acc_ref[...]
        if activation == "gelu":
            # TODO(synk): tanh-approx GELU (EUP-friendly); swap to exact erf if
            # bit-parity with torch.nn.GELU() is required.
            y = 0.5 * y * (1.0 + jnp.tanh(
                0.7978845608028654 * (y + 0.044715 * y * y * y)))
        for e in extra:                       # fused residual adds (free VPU work)
            y = y + e[...].astype(jnp.float32)
        o_ref[...] = y.astype(o_ref.dtype)


def linear(x, w, *, adds=(), activation=None, out_dtype=jnp.bfloat16):
    """x: [M, K] @ w: [K, N] -> [M, N]; bf16 operands, f32 accumulation.

    `adds` are [M, N] tensors summed into the matmul epilogue (residual fusion).
    """
    M, K = x.shape
    Kw, N = w.shape
    assert K == Kw
    tm_cap, tn_cap, tk_cap = _tile_caps()
    TM = _pick_tile(M, tm_cap, 16)
    TN = _pick_tile(N, tn_cap, 128)
    TK = _pick_tile(K, tk_cap, 128)
    grid = (M // TM, N // TN, K // TK)

    in_specs = [pl.BlockSpec((TM, TK), lambda i, j, k: (i, k)),
                pl.BlockSpec((TK, TN), lambda i, j, k: (k, j))]
    in_specs += [pl.BlockSpec((TM, TN), lambda i, j, k: (i, j)) for _ in adds]

    bytes_accessed = 2 * (M * K + K * N + M * N + len(adds) * M * N)
    return pl.pallas_call(
        functools.partial(_linear_kernel, n_extra=len(adds), activation=activation),
        out_shape=jax.ShapeDtypeStruct((M, N), out_dtype),
        grid=grid,
        in_specs=in_specs,
        out_specs=pl.BlockSpec((TM, TN), lambda i, j, k: (i, j)),
        scratch_shapes=[pltpu.VMEM((TM, TN), jnp.float32)],
        compiler_params=pltpu.CompilerParams(
            dimension_semantics=("parallel", "parallel", "arbitrary"),
            vmem_limit_bytes=_vmem_limit_bytes()),
        cost_estimate=pl.CostEstimate(
            flops=2 * M * N * K,
            transcendentals=M * N if activation == "gelu" else 0,
            bytes_accessed=bytes_accessed),
    )(x, w, *adds)


# -------------------------------- layer norm -----------------------------------

def _layernorm_kernel(x_ref, w_ref, b_ref, o_ref, *, eps):
    x = x_ref[...].astype(jnp.float32)
    mu = jnp.mean(x, axis=-1, keepdims=True)
    var = jnp.mean(jnp.square(x - mu), axis=-1, keepdims=True)
    y = (x - mu) * lax.rsqrt(var + eps)
    w = w_ref[...].astype(jnp.float32)
    b = b_ref[...].astype(jnp.float32)
    o_ref[...] = (y * w + b).astype(o_ref.dtype)


def layer_norm(x, w, b, eps, out_dtype=jnp.bfloat16):
    T, H = x.shape
    TT = _pick_tile(T, 1024, 16)
    return pl.pallas_call(
        functools.partial(_layernorm_kernel, eps=eps),
        out_shape=jax.ShapeDtypeStruct((T, H), out_dtype),
        grid=(T // TT,),
        in_specs=[pl.BlockSpec((TT, H), lambda i: (i, 0)),
                  pl.BlockSpec((1, H), lambda i: (0, 0)),
                  pl.BlockSpec((1, H), lambda i: (0, 0))],
        out_specs=pl.BlockSpec((TT, H), lambda i: (i, 0)),
        compiler_params=pltpu.CompilerParams(
            dimension_semantics=("parallel",),
            vmem_limit_bytes=_vmem_limit_bytes()),
    )(x, w.reshape(1, H), b.reshape(1, H))


# ---------------------------------- RoPE ----------------------------------------

def _rope_kernel(x_ref, cos_ref, sin_ref, o_ref, *, n_heads, head_dim):
    cos = cos_ref[...].astype(jnp.float32)
    sin = sin_ref[...].astype(jnp.float32)
    half = head_dim // 2
    outs = []
    for h in range(n_heads):                  # static unroll; lane slices are static
        lo, hi = h * head_dim, (h + 1) * head_dim
        xh = x_ref[:, lo:hi].astype(jnp.float32)
        x1 = xh[:, :half]
        x2 = xh[:, half:]
        # rotate_half(x) = concat(-x2, x1).
        rot = jnp.concatenate([-x2, x1], axis=-1)
        outs.append(xh * cos + rot * sin)
    o_ref[...] = jnp.concatenate(outs, axis=-1).astype(o_ref.dtype)  # lane-dense store


def apply_rope(x, cos, sin, n_heads, head_dim):
    """x: [T, n_heads*head_dim] lane-dense slab; cos/sin: [T, head_dim]."""
    T, HD = x.shape
    assert HD == n_heads * head_dim
    TT = _pick_tile(T, 1024, 16)
    return pl.pallas_call(
        functools.partial(_rope_kernel, n_heads=n_heads, head_dim=head_dim),
        out_shape=jax.ShapeDtypeStruct((T, HD), x.dtype),
        grid=(T // TT,),
        in_specs=[pl.BlockSpec((TT, HD), lambda i: (i, 0)),
                  pl.BlockSpec((TT, head_dim), lambda i: (i, 0)),
                  pl.BlockSpec((TT, head_dim), lambda i: (i, 0))],
        out_specs=pl.BlockSpec((TT, HD), lambda i: (i, 0)),
        compiler_params=pltpu.CompilerParams(
            dimension_semantics=("parallel",),
            vmem_limit_bytes=_vmem_limit_bytes()),
    )(x, cos, sin)


# ---------------------------- flash self-attention ------------------------------

def _flash_attn_kernel(q_ref, k_ref, v_ref, o_ref, m_sc, l_sc, acc_sc, *,
                       n_heads, n_kv_heads, head_dim, sm_scale, tq, tkv):
    qi = pl.program_id(0)
    ki = pl.program_id(1)
    group = n_heads // n_kv_heads

    @pl.when(ki == 0)
    def _():
        m_sc[...] = jnp.full(m_sc.shape, -1e30, m_sc.dtype)
        l_sc[...] = jnp.zeros(l_sc.shape, l_sc.dtype)
        acc_sc[...] = jnp.zeros(acc_sc.shape, acc_sc.dtype)

    # Skip kv tiles that lie entirely above the causal diagonal (prefill, empty KV).
    @pl.when(ki * tkv <= qi * tq + (tq - 1))
    def _():
        row = qi * tq + lax.broadcasted_iota(jnp.int32, (tq, tkv), 0)
        col = ki * tkv + lax.broadcasted_iota(jnp.int32, (tq, tkv), 1)
        causal = col <= row
        for h in range(n_heads):              # static unroll over heads
            kv = h // group
            q = q_ref[:, h * head_dim:(h + 1) * head_dim]
            k = k_ref[:, kv * head_dim:(kv + 1) * head_dim]
            v = v_ref[:, kv * head_dim:(kv + 1) * head_dim]
            # Contract last dims of q and k directly (no XLU transpose of K).
            s = lax.dot_general(q, k, (((1,), (1,)), ((), ())),
                                preferred_element_type=jnp.float32) * sm_scale
            s = jnp.where(causal, s, -1e30)
            m_prev = m_sc[h]                                   # [tq, 1]
            m_new = jnp.maximum(m_prev, jnp.max(s, axis=-1, keepdims=True))
            alpha = jnp.exp(m_prev - m_new)
            p = jnp.where(causal, jnp.exp(s - m_new), 0.0)
            l_sc[h] = alpha * l_sc[h] + jnp.sum(p, axis=-1, keepdims=True)
            acc_sc[h] = alpha * acc_sc[h] + jnp.dot(
                p.astype(v.dtype), v, preferred_element_type=jnp.float32)
            m_sc[h] = m_new

    @pl.when(ki == pl.num_programs(1) - 1)
    def _():
        outs = []
        for h in range(n_heads):
            inv = pl.reciprocal(l_sc[h], approx=True)
            outs.append(acc_sc[h] * inv)
        # Single lane-dense [tq, n_heads*head_dim] store (no masked 64-wide stores).
        o_ref[...] = jnp.concatenate(outs, axis=-1).astype(o_ref.dtype)


def flash_attention(q, k, v, n_heads, n_kv_heads, head_dim):
    """q: [T, NH*D], k/v: [T, NKV*D] (already rotary-embedded) -> [T, NH*D]."""
    T = q.shape[0]
    TQ = _pick_tile(T, 256, 16)
    TKV = _pick_tile(T, 256, 16)
    grid = (T // TQ, T // TKV)
    sm_scale = 1.0 / math.sqrt(head_dim)
    return pl.pallas_call(
        functools.partial(_flash_attn_kernel, n_heads=n_heads,
                          n_kv_heads=n_kv_heads, head_dim=head_dim,
                          sm_scale=sm_scale, tq=TQ, tkv=TKV),
        out_shape=jax.ShapeDtypeStruct((T, n_heads * head_dim), q.dtype),
        grid=grid,
        in_specs=[pl.BlockSpec((TQ, n_heads * head_dim), lambda qi, ki: (qi, 0)),
                  pl.BlockSpec((TKV, n_kv_heads * head_dim), lambda qi, ki: (ki, 0)),
                  pl.BlockSpec((TKV, n_kv_heads * head_dim), lambda qi, ki: (ki, 0))],
        out_specs=pl.BlockSpec((TQ, n_heads * head_dim), lambda qi, ki: (qi, 0)),
        scratch_shapes=[pltpu.VMEM((n_heads, TQ, 1), jnp.float32),
                        pltpu.VMEM((n_heads, TQ, 1), jnp.float32),
                        pltpu.VMEM((n_heads, TQ, head_dim), jnp.float32)],
        compiler_params=pltpu.CompilerParams(
            dimension_semantics=("parallel", "arbitrary"),
            vmem_limit_bytes=_vmem_limit_bytes()),
    )(q, k, v)


# --------------------------------- model glue -----------------------------------

class FalconConfig:
    def __init__(self):
        self.vocab_size = 256
        self.hidden_size = 128
        self.num_attention_heads = 2
        self.num_kv_heads = 2
        self.num_hidden_layers = 2
        self.layer_norm_epsilon = 1e-5
        self.bias = False
        self.rotary = True
        self.alibi = False
        self.parallel_attn = True
        self.new_decoder_architecture = False
        self.max_position_embeddings = 2048
        self.rope_base = 10000.0
        self.ffn_hidden_size = 4 * self.hidden_size


def init_params(cfg, key):
    H, V = cfg.hidden_size, cfg.vocab_size
    NH, NKV = cfg.num_attention_heads, cfg.num_kv_heads
    D = H // NH
    F = cfg.ffn_hidden_size
    keys = jax.random.split(key, 2 + cfg.num_hidden_layers)

    def w(k, shape):
        return (jax.random.normal(k, shape, jnp.float32) * 0.02).astype(jnp.bfloat16)

    params = {
        "embed": jax.random.normal(keys[0], (V, H), jnp.float32) * 0.02,
        "ln_f_w": jnp.ones((H,), jnp.float32),
        "ln_f_b": jnp.zeros((H,), jnp.float32),
        "lm_head": w(keys[1], (H, V)),
        "layers": [],
    }
    for i in range(cfg.num_hidden_layers):
        lk = jax.random.split(keys[2 + i], 4)
        params["layers"].append({
            "ln_w": jnp.ones((H,), jnp.float32),
            "ln_b": jnp.zeros((H,), jnp.float32),
            "w_qkv": w(lk[0], (H, (NH + 2 * NKV) * D)),
            "w_dense": w(lk[1], (H, H)),
            "w_h_to_4h": w(lk[2], (H, F)),
            "w_4h_to_h": w(lk[3], (F, H)),
        })
    return params


def rotary_cos_sin(positions, dim, base):
    inv_freq = 1.0 / (base ** (jnp.arange(0, dim, 2, dtype=jnp.float32) / dim))
    freqs = positions.astype(jnp.float32)[:, None] * inv_freq[None, :]
    emb = jnp.concatenate([freqs, freqs], axis=-1)          # [T, dim]
    return jnp.cos(emb), jnp.sin(emb)


def falcon_forward(params, cfg, input_ids, position_ids):
    """Returns final hidden states [batch, seq, hidden] (as FalconForCausalLM.forward)."""
    B, S = input_ids.shape
    assert B == 1, "synthetic run uses batch=1 (flattened-token causal attention)"
    H = cfg.hidden_size
    NH, NKV = cfg.num_attention_heads, cfg.num_kv_heads
    assert H % NH == 0
    D = H // NH

    # word embedding lookup (glue), bf16 residual stream
    hidden = jnp.take(params["embed"], input_ids.reshape(-1), axis=0)
    hidden = hidden.astype(jnp.bfloat16)                                # [T, H]
    cos, sin = rotary_cos_sin(position_ids.reshape(-1), D, cfg.rope_base)  # [T, D]

    for lp in params["layers"]:
        residual = hidden
        ln_out = layer_norm(hidden, lp["ln_w"], lp["ln_b"], cfg.layer_norm_epsilon)

        # --- self attention (parallel_attn branch) ---
        qkv = linear(ln_out, lp["w_qkv"])                   # [T, (NH+2*NKV)*D] bf16
        # RoPE applied exactly once, to Q and K heads in a single kernel launch
        # (they share the same cos/sin and head_dim).
        qk_rot = apply_rope(qkv[:, :(NH + NKV) * D], cos, sin, NH + NKV, D)
        q = qk_rot[:, :NH * D]                               # lane-dense head slabs
        k = qk_rot[:, NH * D:]
        v = qkv[:, (NH + NKV) * D:]
        attn = flash_attention(q, k, v, NH, NKV, D)          # [T, NH*D], lane-dense
        attn_out = linear(attn, lp["w_dense"])               # [T, H]

        # --- MLP on the same layernorm output; GELU + residual adds fused ---
        h4 = linear(ln_out, lp["w_h_to_4h"], activation="gelu")
        hidden = linear(h4, lp["w_4h_to_h"], adds=(attn_out, residual))

    hidden = layer_norm(hidden, params["ln_f_w"], params["ln_f_b"],
                        cfg.layer_norm_epsilon)
    return hidden.reshape(B, S, H)


def get_logits(params, hidden):
    B, S, H = hidden.shape
    logits = linear(hidden.reshape(-1, H).astype(jnp.bfloat16), params["lm_head"],
                    out_dtype=jnp.float32)
    return logits.reshape(B, S, -1)


# ------------------------------------ main ---------------------------------------

if __name__ == "__main__":
    cfg = FalconConfig()
    key = jax.random.PRNGKey(0)
    pkey, ikey = jax.random.split(key)
    params = init_params(cfg, pkey)

    B, S = 1, 8
    input_ids = jax.random.randint(ikey, (B, S), 0, cfg.vocab_size, dtype=jnp.int32)
    position_ids = jnp.arange(S, dtype=jnp.int32)[None, :]

    hidden = falcon_forward(params, cfg, input_ids, position_ids)   # forward()
    logits = get_logits(params, hidden)                             # get_logits()
    jax.block_until_ready((hidden, logits))
    print("KERNEL_OK")
</pallas_src>

<mosaic_0001>
module attributes {stable_mosaic.version = 11 : i64} {
  func.func @_layernorm_kernel(%arg0: i32, %arg1: memref<8x128xbf16, #tpu.memory_space<vmem>>, %arg2: memref<1x128xf32, #tpu.memory_space<vmem>>, %arg3: memref<1x128xf32, #tpu.memory_space<vmem>>, %arg4: memref<8x128xbf16, #tpu.memory_space<vmem>>) attributes {dimension_semantics = [#tpu.dimension_semantics<parallel>], iteration_bounds = array<i64: 1>, scalar_prefetch = 0 : i64, scratch_operands = 0 : i64, tpu.core_type = #tpu.core_type<tc>, window_params = [{transform_indices = @transform_0, window_bounds = array<i64: 8, 128>}, {pipeline_mode = #tpu.pipeline_mode<synchronous>, transform_indices = @transform_1, window_bounds = array<i64: 1, 128>}, {pipeline_mode = #tpu.pipeline_mode<synchronous>, transform_indices = @transform_2, window_bounds = array<i64: 1, 128>}, {transform_indices = @transform_3, window_bounds = array<i64: 8, 128>}]} {
    %c0 = arith.constant 0 : index
    %c0_0 = arith.constant 0 : index
    %0 = vector.load %arg1[%c0, %c0_0] : memref<8x128xbf16, #tpu.memory_space<vmem>>, vector<8x128xbf16>
    %1 = arith.extf %0 : vector<8x128xbf16> to vector<8x128xf32>
    %cst = arith.constant dense<0.000000e+00> : vector<8xf32>
    %2 = vector.multi_reduction <add>, %1, %cst [1] : vector<8x128xf32> to vector<8xf32>
    %3 = vector.shape_cast %2 : vector<8xf32> to vector<8x1xf32>
    %cst_1 = arith.constant 1.280000e+02 : f32
    %4 = vector.broadcast %cst_1 : f32 to vector<8x1xf32>
    %5 = arith.divf %3, %4 : vector<8x1xf32>
    %6 = vector.broadcast %5 : vector<8x1xf32> to vector<8x128xf32>
    %7 = arith.subf %1, %6 : vector<8x128xf32>
    %8 = arith.mulf %7, %7 : vector<8x128xf32>
    %cst_2 = arith.constant dense<0.000000e+00> : vector<8xf32>
    %9 = vector.multi_reduction <add>, %8, %cst_2 [1] : vector<8x128xf32> to vector<8xf32>
    %10 = vector.shape_cast %9 : vector<8xf32> to vector<8x1xf32>
    %cst_3 = arith.constant 1.280000e+02 : f32
    %11 = vector.broadcast %cst_3 : f32 to vector<8x1xf32>
    %12 = arith.divf %10, %11 : vector<8x1xf32>
    %13 = vector.broadcast %5 : vector<8x1xf32> to vector<8x128xf32>
    %14 = arith.subf %1, %13 : vector<8x128xf32>
    %cst_4 = arith.constant 9.99999974E-6 : f32
    %15 = vector.broadcast %cst_4 : f32 to vector<8x1xf32>
    %16 = arith.addf %12, %15 : vector<8x1xf32>
    %17 = math.rsqrt %16 : vector<8x1xf32>
    %18 = vector.broadcast %17 : vector<8x1xf32> to vector<8x128xf32>
    %19 = arith.mulf %14, %18 : vector<8x128xf32>
    %c0_5 = arith.constant 0 : index
    %c0_6 = arith.constant 0 : index
    %20 = vector.load %arg2[%c0_5, %c0_6] : memref<1x128xf32, #tpu.memory_space<vmem>>, vector<1x128xf32>
    %c0_7 = arith.constant 0 : index
    %c0_8 = arith.constant 0 : index
    %21 = vector.load %arg3[%c0_7, %c0_8] : memref<1x128xf32, #tpu.memory_space<vmem>>, vector<1x128xf32>
    %22 = vector.broadcast %20 : vector<1x128xf32> to vector<8x128xf32>
    %23 = arith.mulf %19, %22 : vector<8x128xf32>
    %24 = vector.broadcast %21 : vector<1x128xf32> to vector<8x128xf32>
    %25 = arith.addf %23, %24 : vector<8x128xf32>
    %26 = arith.truncf %25 : vector<8x128xf32> to vector<8x128xbf16>
    %c0_9 = arith.constant 0 : index
    %c0_10 = arith.constant 0 : index
    %27 = vector.load %arg4[%c0_9, %c0_10] : memref<8x128xbf16, #tpu.memory_space<vmem>>, vector<8x128xbf16>
    tpu.vector_store %arg4[%c0_9, %c0_10], %26 {strides = array<i32>} : memref<8x128xbf16, #tpu.memory_space<vmem>>, vector<8x128xbf16>,
    return
  }
  func.func @transform_0(%arg0: i32) -> (i32, i32) {
    %c0_i32 = arith.constant 0 : i32
    %c0_i32_0 = arith.constant 0 : i32
    return %arg0, %c0_i32 : i32, i32
  }
  func.func @transform_1(%arg0: i32) -> (i32, i32) {
    %c0_i32 = arith.constant 0 : i32
    %c0_i32_0 = arith.constant 0 : i32
    %c0_i32_1 = arith.constant 0 : i32
    return %c0_i32, %c0_i32_0 : i32, i32
  }
  func.func @transform_2(%arg0: i32) -> (i32, i32) {
    %c0_i32 = arith.constant 0 : i32
    %c0_i32_0 = arith.constant 0 : i32
    %c0_i32_1 = arith.constant 0 : i32
    return %c0_i32, %c0_i32_0 : i32, i32
  }
  func.func @transform_3(%arg0: i32) -> (i32, i32) {
    %c0_i32 = arith.constant 0 : i32
    %c0_i32_0 = arith.constant 0 : i32
    return %arg0, %c0_i32 : i32, i32
  }
}

</mosaic_0001>

<llo_original>
// kernel: tpu_custom_call.1
$region0: #{tpu_custom_call.1}
  #allocation0 [shape = 'u32[]', space=smem, size = 0x4, offset = 0x4, fixed_abs, tag = 'smem constant byte address 0x4 - core index']
  #allocation1 [shape = 'u32[144,128]{1,0:T(1,128)}', space=vmem, size = 0x12000, scoped, tag = 'internal scratch']
  %s0 = inlined_call_operand.hbm [shape: bf16[8,128], index: 0, kind: input, shape index: {}]
  %s1 = inlined_call_operand.vmem [shape: f32[1,128], index: 1, kind: input, shape index: {}]
  %s2 = inlined_call_operand.vmem [shape: f32[1,128], index: 2, kind: input, shape index: {}]
  %s3 = inlined_call_operand.hbm [shape: bf16[8,128], index: 3, kind: output, shape index: {}]
  %s4 = sld [smem:[#allocation0]]
  $region26: #{tpu_custom_call.1} parent=0
    _
  %s6 = ssub.s32 1, %s4
  %s7 = scalar_select 0, %s6, %s4
  $region1: #{tpu_custom_call.1} parent=0
    #allocation2 [shape = 'u8[2048]{0}', space=vmem, size = 0x800, scoped, tag = 'input window, operand 0, single buffered']
    #allocation3 [shape = 's32[1]{0}', space=sflag, size = 0x4, scoped, tag = 'scoped memory for tpu_custom_call.1']
    #allocation4 [shape = 's32[1]{0}', space=sflag, size = 0x4, scoped, tag = 'scoped memory for tpu_custom_call.1']
    #allocation5 [shape = 'u8[2048]{0}', space=vmem, size = 0x800, scoped, tag = 'output window, operand 0, single buffered']
    %8 = vsyncpa [#allocation3], 0
    %9 = vsyncpa [#allocation4], 0
    // Predicated region
    $region2: #{tpu_custom_call.1} parent=1 // pred_check
      _
    $region3: #{tpu_custom_call.1} parent=1 // pred_check_branch
      %11 = sbr.rel (0) target = $region5
    $region4: #{tpu_custom_call.1} parent=1 // pred_region
      %s13 = ssub.s32 64, 64
      %14 = vsyncadd [#allocation3], %s13
      %s16 = sshll.u32 [#allocation2], 4
      %s17 = int_to_ptr.vmem [resolvable:$true] %s16
      %19 = dma.hbm_to_vmem [thread:$0]  %s0, 64, %s17, [#allocation3]
    $region5: #{tpu_custom_call.1} parent=1 // pred_fallthru
      _
    // Predicated region
    $region6: #{tpu_custom_call.1} parent=1 // pred_check
      _
    $region7: #{tpu_custom_call.1} parent=1 // pred_check_branch
      %21 = sbr.rel (0) target = $region9
    $region8: #{tpu_custom_call.1} parent=1 // pred_region
      _
    $region9: #{tpu_custom_call.1} parent=1 // pred_fallthru
      _
    // Predicated region
    $region10: #{tpu_custom_call.1} parent=1 // pred_check
      _
    $region11: #{tpu_custom_call.1} parent=1 // pred_check_branch
      %23 = sbr.rel (0) target = $region13
    $region12: #{tpu_custom_call.1} parent=1 // pred_region
      _
    $region13: #{tpu_custom_call.1} parent=1 // pred_fallthru
      _
    // Predicated region
    $region14: #{tpu_custom_call.1} parent=1 // pred_check
      _
    $region15: #{tpu_custom_call.1} parent=1 // pred_check_branch
      %25 = sbr.rel (0) target = $region17
    $region16: #{tpu_custom_call.1} parent=1 // pred_region
      %26 = dma.done [#allocation3], 64
    $region17: #{tpu_custom_call.1} parent=1 // pred_fallthru
      _
    %v27 = vld [vmem:[#allocation2] sm:$0xf]
    %v28 = vunpack.c.l.bf16 %v27
    %29 = vadd.xlane.f32.xlu0 %v28
    %v30 = vpop.xlane.xlu0 %29
    %v31 = vrcp.pop 128.0
    %v32 = vmul.f32 %v30, %v31
    %v33 = vsub.f32 %v28, %v32
    %v34 = vmul.f32 %v33, %v33
    %35 = vadd.xlane.f32.xlu0 %v34
    %v36 = vpop.xlane.xlu0 %35
    %v37 = vmul.f32 %v36, %v31
    %v38 = vadd.f32 %v37, 1e-05
    %v39 = vrsqrt.pop %v38
    %v40 = vmul.f32 %v33, %v39
    %v41 = vld [vmem:[%s1] sm:$0x1]
    %v42 = vld [vmem:[%s2] sm:$0x1]
    %v44 = vlaneseq
    %v45 = vshrl.u32 %v44, 7
    %v46 = vsub.s32 0, %v45
    %v47 = vrot.slane %v41, %v46
    %v49 = vmul.f32 %v40, %v47
    %v51 = vlaneseq
    %v52 = vshrl.u32 %v51, 7
    %v53 = vsub.s32 0, %v52
    %v54 = vrot.slane %v42, %v53
    %v56 = vadd.f32 %v49, %v54
    %v57 = vpack.c.bf16 %v56, %v56
    %58 = vst [vmem:[#allocation5] sm:$0xf] %v57
    // Predicated region
    $region18: #{tpu_custom_call.1} parent=1 // pred_check
      _
    $region19: #{tpu_custom_call.1} parent=1 // pred_check_branch
      %60 = sbr.rel (0) target = $region21
    $region20: #{tpu_custom_call.1} parent=1 // pred_region
      %s62 = ssub.s32 64, 64
      %63 = vsyncadd [#allocation4], %s62
      %s65 = sshll.u32 [#allocation5], 4
      %s66 = int_to_ptr.vmem [resolvable:$true] %s65
      %68 = dma.vmem_to_hbm [thread:$0]  %s66, 64, %s3, [#allocation4]
    $region21: #{tpu_custom_call.1} parent=1 // pred_fallthru
      _
    // Predicated region
    $region22: #{tpu_custom_call.1} parent=1 // pred_check
      _
    $region23: #{tpu_custom_call.1} parent=1 // pred_check_branch
      %70 = sbr.rel (0) target = $region25
    $region24: #{tpu_custom_call.1} parent=1 // pred_region
      %71 = dma.done [#allocation4], 64
    $region25: #{tpu_custom_call.1} parent=1 // pred_fallthru
      _
    %72 = vsyncpa [#allocation3], 1
    %73 = vsyncpa [#allocation4], 1

</llo_original>
